<compile_context>
chip_gen: v7x
topology: tpu7x:2x2x1
jax: 0.10.0
libtpu: 0.0.40
codegen_flags: <defaults>
</compile_context>

<pallas_src>
import functools

import jax
import jax.numpy as jnp
from jax import lax
from jax.experimental import pallas as pl
from jax.experimental.pallas import tpu as pltpu


def _hsigmoid(v):
    # HSigmoid(bias=3, divisor=6): clamp((v + 3) / 6, 0, 1)
    return jnp.clip((v + 3.0) * (1.0 / 6.0), 0.0, 1.0)


def _vmem_capacity_bytes():
    """Physical VMEM capacity per core; conservative 64 MiB fallback (v7x)."""
    try:
        info = pltpu.get_tpu_info()
        for name in ("vmem_capacity_bytes", "vmem_size_bytes", "vmem_bytes"):
            cap = getattr(info, name, None)
            if cap:
                return int(cap)
    except Exception:
        pass
    return 64 * 1024 * 1024


def _cs_attention_kernel(x_ref, w1_ref, b1_ref, w2_ref, b2_ref, wc_ref, bc_ref,
                         o_ref, *, w_img):
    bb, c, hw = x_ref.shape
    inv_hw = 1.0 / hw
    inv_c = 1.0 / c

    # Loop-invariant small parameter loads (hoisted out of the batch loop).
    w1 = w1_ref[...]      # (Cr, C)
    b1 = b1_ref[...]      # (Cr, 1)
    w2 = w2_ref[...]      # (2C, Cr)
    b2 = b2_ref[...]      # (2C, 1)
    wc = wc_ref[...]      # (9, 4, 1)  per-tap weight columns [wa, wa, wb, wb]
    bc = bc_ref[...]      # (4, 1)     conv bias column       [ba, ba, bb, bb]

    # Wrap-protection masks for the flattened 3x3 conv, built in-kernel.
    pos = lax.broadcasted_iota(jnp.int32, (4, hw), 1)
    col = pos % w_img
    mask_left = col != 0                      # zero source col 0   (dx = +1 taps)
    mask_right = col != w_img - 1             # zero source col W-1 (dx = -1 taps)
    mask_not_first_row = pos >= w_img         # zero dest row 0     (dy = -1 taps)
    mask_not_last_row = pos < hw - w_img      # zero dest row H-1   (dy = +1 taps)

    bias_map = jnp.broadcast_to(bc, (4, hw))  # hoisted conv-bias accumulator init

    def body(i, carry):
        x = x_ref[i]                                                    # (C, HW)

        # ---------------- ChannelAttention ----------------
        avg_p = jnp.sum(x, axis=1, keepdims=True, dtype=jnp.float32) * inv_hw   # (C,1)
        max_p = jnp.max(x, axis=1, keepdims=True).astype(jnp.float32)           # (C,1)
        p = jnp.concatenate([avg_p, max_p], axis=1)                      # (C, 2)

        h = jnp.dot(w1, p, preferred_element_type=jnp.float32) + b1      # (Cr, 2)
        h = h * jax.nn.sigmoid(h)                                        # SiLU
        fc = _hsigmoid(jnp.dot(w2, h, preferred_element_type=jnp.float32) + b2)  # (2C,2)

        a_avg = fc[:c, 0:1].astype(x.dtype)
        a_max = fc[:c, 1:2].astype(x.dtype)
        b_avg = fc[c:, 0:1].astype(x.dtype)
        b_max = fc[c:, 1:2].astype(x.dtype)
        y = jnp.maximum(a_avg * x + b_avg, a_max * x + b_max)            # (C, HW)

        # ---------------- SpatialAttention ----------------
        mean_m = jnp.sum(y, axis=0, keepdims=True, dtype=jnp.float32) * inv_c   # (1,HW)
        max_m = jnp.max(y, axis=0, keepdims=True).astype(jnp.float32)           # (1,HW)

        # Stacked map [mean, max, mean, max]: one pass of 9 rolled taps with VPU
        # FMAs produces all four conv maps (rows: a_mean, a_max, b_mean, b_max).
        m4 = jnp.concatenate([mean_m, max_m, mean_m, max_m], axis=0)     # (4, HW)
        src_by_dx = {
            -1: jnp.where(mask_right, m4, 0.0),
            0: m4,
            1: jnp.where(mask_left, m4, 0.0),
        }
        acc = bias_map
        for t in range(9):                  # tap index t = kh*3 + kw
            dy, dx = t // 3 - 1, t % 3 - 1
            s = dy * w_img + dx             # tap[p] = src[p + s] (zero outside)
            tap = src_by_dx[dx]
            if s != 0:
                tap = pltpu.roll(tap, shift=(-s) % hw, axis=1)
            if dy == 1:
                tap = jnp.where(mask_not_last_row, tap, 0.0)
            elif dy == -1:
                tap = jnp.where(mask_not_first_row, tap, 0.0)
            acc = acc + tap * wc[t]         # (4,HW) FMA against (4,1) weights
        sm = _hsigmoid(acc)                 # (4, HW)

        sa_mean = sm[0:1].astype(y.dtype)
        sa_max = sm[1:2].astype(y.dtype)
        sb_mean = sm[2:3].astype(y.dtype)
        sb_max = sm[3:4].astype(y.dtype)
        o_ref[i] = jnp.maximum(sa_mean * y + sb_mean, sa_max * y + sb_max)
        return carry

    if bb == 1:
        body(0, 0)
    else:
        lax.fori_loop(0, bb, body, 0)


def cs_attention_pallas(x, w1, b1, w2, b2, conv_w, conv_b):
    """CSAttention forward.

    x: (B, C, H, W)
    w1: (Cr, C), b1: (Cr,)              -- ChannelAttention fc[0] (1x1 conv, squeezed)
    w2: (2C, Cr), b2: (2C,)             -- ChannelAttention fc[1] (1x1 conv, squeezed)
    conv_w: (2, 1, 3, 3), conv_b: (2,)  -- SpatialAttention 3x3 conv
    """
    B, C, H, W = x.shape
    HW = H * W
    Cr = w1.shape[0]
    f32 = jnp.float32

    # NCHW flattened to (B, C, H*W): free view, lane dim = H*W (lane dense).
    x_flat = x.reshape(B, C, HW)

    # Wrapper-side parameter plumbing.
    w1f = w1.astype(f32)
    b1r = b1.reshape(Cr, 1).astype(f32)
    w2f = w2.astype(f32)                        # (2C, Cr) -- merged FC, split in-kernel
    b2r = b2.reshape(2 * C, 1).astype(f32)
    wc_flat = conv_w.reshape(2, 9).astype(f32)  # (out_channel, tap = kh*3 + kw)
    wc9 = jnp.stack([wc_flat[0], wc_flat[0], wc_flat[1], wc_flat[1]],
                    axis=1)[:, :, None]         # (9, 4, 1)
    bc4 = jnp.stack([conv_b[0], conv_b[0], conv_b[1], conv_b[1]]
                    ).reshape(4, 1).astype(f32)

    # ---- batch packing / VMEM budgeting ----
    MiB = 1024 * 1024
    vmem_cap = _vmem_capacity_bytes()           # 128 MiB (v5e/v6e) or 64 MiB/TC (v7x)
    usable = max(16 * MiB, vmem_cap - 12 * MiB)
    db = jnp.dtype(x.dtype).itemsize
    batch_block = C * HW * db                   # one batch of input (== output)
    pipeline_per_batch = 4 * batch_block        # in + out blocks, double buffered
    # In-kernel live temporaries (one batch at a time thanks to fori_loop):
    # y + out in x.dtype, f32 conv scratch (a few (4,HW) maps), tiny params.
    temp_bytes = 3 * C * HW * db + 64 * HW + MiB
    bb_vmem = max(1, (usable - temp_bytes) // max(1, pipeline_per_batch))
    bb_cap = max(1, B // 4)                     # >= 4 grid steps (>= 2 per core on 2-TC parts)
    bb = int(max(1, min(B, bb_vmem, bb_cap)))
    while bb > 1 and B % bb:
        bb -= 1

    needed = pipeline_per_batch * bb + temp_bytes
    vmem_limit = int(min(max(32 * MiB, needed + 8 * MiB), vmem_cap - 8 * MiB))

    kernel = functools.partial(_cs_attention_kernel, w_img=W)

    out_flat = pl.pallas_call(
        kernel,
        out_shape=jax.ShapeDtypeStruct((B, C, HW), x.dtype),
        grid_spec=pltpu.PrefetchScalarGridSpec(
            num_scalar_prefetch=0,
            grid=(B // bb,),
            in_specs=[
                pl.BlockSpec((bb, C, HW), lambda b: (b, 0, 0)),
                pl.BlockSpec((Cr, C), lambda b: (0, 0)),
                pl.BlockSpec((Cr, 1), lambda b: (0, 0)),
                pl.BlockSpec((2 * C, Cr), lambda b: (0, 0)),
                pl.BlockSpec((2 * C, 1), lambda b: (0, 0)),
                pl.BlockSpec((9, 4, 1), lambda b: (0, 0, 0)),
                pl.BlockSpec((4, 1), lambda b: (0, 0)),
            ],
            out_specs=pl.BlockSpec((bb, C, HW), lambda b: (b, 0, 0)),
        ),
        compiler_params=pltpu.CompilerParams(
            dimension_semantics=("parallel",),
            vmem_limit_bytes=vmem_limit,
        ),
    )(x_flat, w1f, b1r, w2f, b2r, wc9, bc4)

    return out_flat.reshape(B, C, H, W)


def cs_attention_ref(x, w1, b1, w2, b2, conv_w, conv_b):
    """Pure-JAX reference (NCHW) for verification."""
    B, C, H, W = x.shape
    prec = lax.Precision.HIGHEST

    def hsig(v):
        return jnp.clip((v + 3.0) / 6.0, 0.0, 1.0)

    def fc(p):  # (B, C) -> (B, 2C)
        h = jnp.dot(p, w1.T, precision=prec) + b1
        h = h * jax.nn.sigmoid(h)
        return hsig(jnp.dot(h, w2.T, precision=prec) + b2)

    avg_p = jnp.mean(x, axis=(2, 3))
    max_p = jnp.max(x, axis=(2, 3))
    y_avg = fc(avg_p)
    y_max = fc(max_p)
    a_avg = y_avg[:, :C, None, None]
    b_avg = y_avg[:, C:, None, None]
    a_max = y_max[:, :C, None, None]
    b_max = y_max[:, C:, None, None]
    y = jnp.maximum(a_avg * x + b_avg, a_max * x + b_max)

    mean_m = jnp.mean(y, axis=1, keepdims=True)
    max_m = jnp.max(y, axis=1, keepdims=True)

    def sconv(m):
        out = lax.conv_general_dilated(
            m, conv_w, window_strides=(1, 1), padding="SAME",
            dimension_numbers=("NCHW", "OIHW", "NCHW"), precision=prec)
        return hsig(out + conv_b[None, :, None, None])

    ca = sconv(mean_m)
    cm = sconv(max_m)
    return jnp.maximum(ca[:, 0:1] * y + ca[:, 1:2], cm[:, 0:1] * y + cm[:, 1:2])


if __name__ == "__main__":
    B, C, H, W = 2, 32, 16, 16
    reduction = 16
    Cr = C // reduction          # 2
    expansion = 2                # ChannelAttention fc output is 2*C channels

    key = jax.random.PRNGKey(0)
    kx, k1, k2, k3, k4, k5, k6 = jax.random.split(key, 7)

    x = jax.random.normal(kx, (B, C, H, W), dtype=jnp.float32)
    # Deterministic synthetic parameters (1x1 conv weights squeezed to 2D).
    w1 = 0.1 * jax.random.normal(k1, (Cr, C), dtype=jnp.float32)
    b1 = 0.1 * jax.random.normal(k2, (Cr,), dtype=jnp.float32)
    w2 = 0.1 * jax.random.normal(k3, (C * expansion, Cr), dtype=jnp.float32)
    b2 = 0.1 * jax.random.normal(k4, (C * expansion,), dtype=jnp.float32)
    conv_w = 0.2 * jax.random.normal(k5, (2, 1, 3, 3), dtype=jnp.float32)
    conv_b = 0.1 * jax.random.normal(k6, (2,), dtype=jnp.float32)

    out = cs_attention_pallas(x, w1, b1, w2, b2, conv_w, conv_b)
    out = jax.block_until_ready(out)

    ref = cs_attention_ref(x, w1, b1, w2, b2, conv_w, conv_b)
    assert out.shape == (B, C, H, W)
    max_err = float(jnp.max(jnp.abs(out - ref)))
    assert jnp.allclose(out, ref, atol=1e-4, rtol=1e-4), (
        f"mismatch vs reference (max abs err {max_err})")

    print("KERNEL_OK")
</pallas_src>

<mosaic_0001>
module attributes {stable_mosaic.version = 11 : i64} {
  func.func @_cs_attention_kernel(%arg0: i32, %arg1: memref<1x32x256xf32, #tpu.memory_space<vmem>>, %arg2: memref<2x32xf32, #tpu.memory_space<vmem>>, %arg3: memref<2x1xf32, #tpu.memory_space<vmem>>, %arg4: memref<64x2xf32, #tpu.memory_space<vmem>>, %arg5: memref<64x1xf32, #tpu.memory_space<vmem>>, %arg6: memref<9x4x1xf32, #tpu.memory_space<vmem>>, %arg7: memref<4x1xf32, #tpu.memory_space<vmem>>, %arg8: memref<1x32x256xf32, #tpu.memory_space<vmem>>) attributes {dimension_semantics = [#tpu.dimension_semantics<parallel>], iteration_bounds = array<i64: 2>, scalar_prefetch = 0 : i64, scratch_operands = 0 : i64, tpu.core_type = #tpu.core_type<tc>, window_params = [{transform_indices = @transform_0, window_bounds = array<i64: 1, 32, 256>}, {pipeline_mode = #tpu.pipeline_mode<synchronous>, transform_indices = @transform_1, window_bounds = array<i64: 2, 32>}, {pipeline_mode = #tpu.pipeline_mode<synchronous>, transform_indices = @transform_2, window_bounds = array<i64: 2, 1>}, {pipeline_mode = #tpu.pipeline_mode<synchronous>, transform_indices = @transform_3, window_bounds = array<i64: 64, 2>}, {pipeline_mode = #tpu.pipeline_mode<synchronous>, transform_indices = @transform_4, window_bounds = array<i64: 64, 1>}, {pipeline_mode = #tpu.pipeline_mode<synchronous>, transform_indices = @transform_5, window_bounds = array<i64: 9, 4, 1>}, {pipeline_mode = #tpu.pipeline_mode<synchronous>, transform_indices = @transform_6, window_bounds = array<i64: 4, 1>}, {transform_indices = @transform_7, window_bounds = array<i64: 1, 32, 256>}]} {
    %c0 = arith.constant 0 : index
    %c0_0 = arith.constant 0 : index
    %0 = vector.load %arg2[%c0, %c0_0] : memref<2x32xf32, #tpu.memory_space<vmem>>, vector<2x32xf32>
    %c0_1 = arith.constant 0 : index
    %c0_2 = arith.constant 0 : index
    %1 = vector.load %arg3[%c0_1, %c0_2] : memref<2x1xf32, #tpu.memory_space<vmem>>, vector<2x1xf32>
    %c0_3 = arith.constant 0 : index
    %c0_4 = arith.constant 0 : index
    %2 = vector.load %arg4[%c0_3, %c0_4] : memref<64x2xf32, #tpu.memory_space<vmem>>, vector<64x2xf32>
    %c0_5 = arith.constant 0 : index
    %c0_6 = arith.constant 0 : index
    %3 = vector.load %arg5[%c0_5, %c0_6] : memref<64x1xf32, #tpu.memory_space<vmem>>, vector<64x1xf32>
    %c0_7 = arith.constant 0 : index
    %c0_8 = arith.constant 0 : index
    %c0_9 = arith.constant 0 : index
    %4 = vector.load %arg6[%c0_7, %c0_8, %c0_9] : memref<9x4x1xf32, #tpu.memory_space<vmem>>, vector<9x4x1xf32>
    %c0_10 = arith.constant 0 : index
    %c0_11 = arith.constant 0 : index
    %5 = vector.load %arg7[%c0_10, %c0_11] : memref<4x1xf32, #tpu.memory_space<vmem>>, vector<4x1xf32>
    %6 = tpu.iota {dimensions = array<i32: 1>} : vector<4x256xi32>
    %c16_i32 = arith.constant 16 : i32
    %c0_i32 = arith.constant 0 : i32
    %7 = arith.cmpi eq, %c16_i32, %c0_i32 : i32
    %c1_i32 = arith.constant 1 : i32
    %8 = arith.select %7, %c1_i32, %c16_i32 : i32
    %9 = vector.broadcast %8 : i32 to vector<4x256xi32>
    %10 = arith.remsi %6, %9 : vector<4x256xi32>
    %c0_i32_12 = arith.constant 0 : i32
    %11 = vector.broadcast %c0_i32_12 : i32 to vector<4x256xi32>
    %12 = arith.cmpi ne, %10, %11 : vector<4x256xi32>
    %c0_i32_13 = arith.constant 0 : i32
    %13 = vector.broadcast %c0_i32_13 : i32 to vector<4x256xi32>
    %14 = arith.cmpi slt, %10, %13 : vector<4x256xi32>
    %c0_i32_14 = arith.constant 0 : i32
    %15 = arith.cmpi slt, %8, %c0_i32_14 : i32
    %16 = vector.broadcast %15 : i1 to vector<4x256xi1>
    %17 = vector.broadcast %16 : vector<4x256xi1> to vector<4x256xi1>
    %18 = arith.xori %14, %17 : vector<4x256xi1>
    %19 = arith.andi %18, %12 : vector<4x256xi1>
    %20 = vector.broadcast %8 : i32 to vector<4x256xi32>
    %21 = arith.addi %10, %20 : vector<4x256xi32>
    %22 = arith.select %19, %21, %10 : vector<4x256xi1>, vector<4x256xi32>
    %c0_i32_15 = arith.constant 0 : i32
    %23 = vector.broadcast %c0_i32_15 : i32 to vector<4x256xi32>
    %24 = arith.cmpi ne, %22, %23 : vector<4x256xi32>
    %c15_i32 = arith.constant 15 : i32
    %25 = vector.broadcast %c15_i32 : i32 to vector<4x256xi32>
    %26 = arith.cmpi ne, %22, %25 : vector<4x256xi32>
    %c16_i32_16 = arith.constant 16 : i32
    %27 = vector.broadcast %c16_i32_16 : i32 to vector<4x256xi32>
    %28 = arith.cmpi sge, %6, %27 : vector<4x256xi32>
    %c240_i32 = arith.constant 240 : i32
    %29 = vector.broadcast %c240_i32 : i32 to vector<4x256xi32>
    %30 = arith.cmpi slt, %6, %29 : vector<4x256xi32>
    %31 = vector.shape_cast %5 : vector<4x1xf32> to vector<4x1xf32>
    %32 = vector.broadcast %31 : vector<4x1xf32> to vector<4x256xf32>
    %c0_17 = arith.constant 0 : index
    %c0_18 = arith.constant 0 : index
    %c0_19 = arith.constant 0 : index
    %33 = vector.load %arg1[%c0_17, %c0_18, %c0_19] : memref<1x32x256xf32, #tpu.memory_space<vmem>>, vector<1x32x256xf32>
    %34 = vector.shape_cast %33 : vector<1x32x256xf32> to vector<32x256xf32>
    %cst = arith.constant dense<0.000000e+00> : vector<32xf32>
    %35 = vector.multi_reduction <add>, %34, %cst [1] : vector<32x256xf32> to vector<32xf32>
    %36 = vector.shape_cast %35 : vector<32xf32> to vector<32x1xf32>
    %cst_20 = arith.constant 3.906250e-03 : f32
    %37 = vector.broadcast %cst_20 : f32 to vector<32x1xf32>
    %38 = arith.mulf %36, %37 : vector<32x1xf32>
    %cst_21 = arith.constant dense<0xFF800000> : vector<32xf32>
    %39 = vector.multi_reduction <maximumf>, %34, %cst_21 [1] : vector<32x256xf32> to vector<32xf32>
    %40 = vector.shape_cast %39 : vector<32xf32> to vector<32x1xf32>
    %41 = tpu.concatenate %38, %40 in 1 : vector<32x1xf32>, vector<32x1xf32> -> vector<32x2xf32>
    %cst_22 = arith.constant dense<0.000000e+00> : vector<2x2xf32>
    %42 = tpu.matmul %0, %41, %cst_22 {dimension_numbers = #tpu.dot_dimension_numbers<[1], [0], [0], [1], [0, 0, 1, 1], [], []>} : vector<2x32xf32>, vector<32x2xf32>, vector<2x2xf32> -> vector<2x2xf32>
    %43 = vector.broadcast %1 : vector<2x1xf32> to vector<2x2xf32>
    %44 = arith.addf %42, %43 : vector<2x2xf32>
    %45 = arith.negf %44 : vector<2x2xf32>
    %46 = math.exp %45 : vector<2x2xf32>
    %cst_23 = arith.constant 1.000000e+00 : f32
    %47 = vector.broadcast %cst_23 : f32 to vector<2x2xf32>
    %48 = arith.addf %47, %46 : vector<2x2xf32>
    %49 = arith.divf %47, %48 : vector<2x2xf32>
    %50 = arith.mulf %44, %49 : vector<2x2xf32>
    %cst_24 = arith.constant dense<0.000000e+00> : vector<64x2xf32>
    %51 = tpu.matmul %2, %50, %cst_24 {dimension_numbers = #tpu.dot_dimension_numbers<[1], [0], [0], [1], [0, 0, 1, 1], [], []>} : vector<64x2xf32>, vector<2x2xf32>, vector<64x2xf32> -> vector<64x2xf32>
    %52 = vector.broadcast %3 : vector<64x1xf32> to vector<64x2xf32>
    %53 = arith.addf %51, %52 : vector<64x2xf32>
    %cst_25 = arith.constant 3.000000e+00 : f32
    %54 = vector.broadcast %cst_25 : f32 to vector<64x2xf32>
    %55 = arith.addf %53, %54 : vector<64x2xf32>
    %cst_26 = arith.constant 0.166666672 : f32
    %56 = vector.broadcast %cst_26 : f32 to vector<64x2xf32>
    %57 = arith.mulf %55, %56 : vector<64x2xf32>
    %cst_27 = arith.constant 0.000000e+00 : f32
    %cst_28 = arith.constant 1.000000e+00 : f32
    %58 = vector.broadcast %cst_27 : f32 to vector<64x2xf32>
    %59 = arith.maximumf %58, %57 : vector<64x2xf32>
    %60 = vector.broadcast %cst_28 : f32 to vector<64x2xf32>
    %61 = arith.minimumf %60, %59 : vector<64x2xf32>
    %62 = vector.extract_strided_slice %61 {offsets = [0, 0], sizes = [32, 1], strides = [1, 1]} : vector<64x2xf32> to vector<32x1xf32>
    %63 = vector.extract_strided_slice %61 {offsets = [0, 1], sizes = [32, 1], strides = [1, 1]} : vector<64x2xf32> to vector<32x1xf32>
    %64 = vector.extract_strided_slice %61 {offsets = [32, 0], sizes = [32, 1], strides = [1, 1]} : vector<64x2xf32> to vector<32x1xf32>
    %65 = vector.extract_strided_slice %61 {offsets = [32, 1], sizes = [32, 1], strides = [1, 1]} : vector<64x2xf32> to vector<32x1xf32>
    %66 = vector.broadcast %62 : vector<32x1xf32> to vector<32x256xf32>
    %67 = arith.mulf %66, %34 : vector<32x256xf32>
    %68 = vector.broadcast %64 : vector<32x1xf32> to vector<32x256xf32>
    %69 = arith.addf %67, %68 : vector<32x256xf32>
    %70 = vector.broadcast %63 : vector<32x1xf32> to vector<32x256xf32>
    %71 = arith.mulf %70, %34 : vector<32x256xf32>
    %72 = vector.broadcast %65 : vector<32x1xf32> to vector<32x256xf32>
    %73 = arith.addf %71, %72 : vector<32x256xf32>
    %74 = arith.maximumf %69, %73 : vector<32x256xf32>
    %cst_29 = arith.constant dense<0.000000e+00> : vector<256xf32>
    %75 = vector.multi_reduction <add>, %74, %cst_29 [0] : vector<32x256xf32> to vector<256xf32>
    %76 = vector.shape_cast %75 : vector<256xf32> to vector<1x256xf32>
    %cst_30 = arith.constant 3.125000e-02 : f32
    %77 = vector.broadcast %cst_30 : f32 to vector<1x256xf32>
    %78 = arith.mulf %76, %77 : vector<1x256xf32>
    %cst_31 = arith.constant dense<0xFF800000> : vector<256xf32>
    %79 = vector.multi_reduction <maximumf>, %74, %cst_31 [0] : vector<32x256xf32> to vector<256xf32>
    %80 = vector.shape_cast %79 : vector<256xf32> to vector<1x256xf32>
    %81 = tpu.concatenate %78, %80, %78, %80 in 0 : vector<1x256xf32>, vector<1x256xf32>, vector<1x256xf32>, vector<1x256xf32> -> vector<4x256xf32>
    %cst_32 = arith.constant 0.000000e+00 : f32
    %82 = vector.broadcast %cst_32 : f32 to vector<4x256xf32>
    %83 = arith.select %26, %81, %82 : vector<4x256xi1>, vector<4x256xf32>
    %cst_33 = arith.constant 0.000000e+00 : f32
    %84 = vector.broadcast %cst_33 : f32 to vector<4x256xf32>
    %85 = arith.select %24, %81, %84 : vector<4x256xi1>, vector<4x256xf32>
    %c17_i32 = arith.constant 17 : i32
    %86 = tpu.dynamic_rotate %83 by %c17_i32 dim 1 : vector<4x256xf32>, i32 -> vector<4x256xf32>
    %cst_34 = arith.constant 0.000000e+00 : f32
    %87 = vector.broadcast %cst_34 : f32 to vector<4x256xf32>
    %88 = arith.select %28, %86, %87 : vector<4x256xi1>, vector<4x256xf32>
    %89 = vector.extract_strided_slice %4 {offsets = [0, 0, 0], sizes = [1, 4, 1], strides = [1, 1, 1]} : vector<9x4x1xf32> to vector<1x4x1xf32>
    %90 = vector.shape_cast %89 : vector<1x4x1xf32> to vector<4x1xf32>
    %91 = vector.broadcast %90 : vector<4x1xf32> to vector<4x256xf32>
    %92 = arith.mulf %88, %91 : vector<4x256xf32>
    %93 = arith.addf %32, %92 : vector<4x256xf32>
    %c16_i32_35 = arith.constant 16 : i32
    %94 = tpu.dynamic_rotate %81 by %c16_i32_35 dim 1 : vector<4x256xf32>, i32 -> vector<4x256xf32>
    %cst_36 = arith.constant 0.000000e+00 : f32
    %95 = vector.broadcast %cst_36 : f32 to vector<4x256xf32>
    %96 = arith.select %28, %94, %95 : vector<4x256xi1>, vector<4x256xf32>
    %97 = vector.extract_strided_slice %4 {offsets = [1, 0, 0], sizes = [1, 4, 1], strides = [1, 1, 1]} : vector<9x4x1xf32> to vector<1x4x1xf32>
    %98 = vector.shape_cast %97 : vector<1x4x1xf32> to vector<4x1xf32>
    %99 = vector.broadcast %98 : vector<4x1xf32> to vector<4x256xf32>
    %100 = arith.mulf %96, %99 : vector<4x256xf32>
    %101 = arith.addf %93, %100 : vector<4x256xf32>
    %c15_i32_37 = arith.constant 15 : i32
    %102 = tpu.dynamic_rotate %85 by %c15_i32_37 dim 1 : vector<4x256xf32>, i32 -> vector<4x256xf32>
    %cst_38 = arith.constant 0.000000e+00 : f32
    %103 = vector.broadcast %cst_38 : f32 to vector<4x256xf32>
    %104 = arith.select %28, %102, %103 : vector<4x256xi1>, vector<4x256xf32>
    %105 = vector.extract_strided_slice %4 {offsets = [2, 0, 0], sizes = [1, 4, 1], strides = [1, 1, 1]} : vector<9x4x1xf32> to vector<1x4x1xf32>
    %106 = vector.shape_cast %105 : vector<1x4x1xf32> to vector<4x1xf32>
    %107 = vector.broadcast %106 : vector<4x1xf32> to vector<4x256xf32>
    %108 = arith.mulf %104, %107 : vector<4x256xf32>
    %109 = arith.addf %101, %108 : vector<4x256xf32>
    %c1_i32_39 = arith.constant 1 : i32
    %110 = tpu.dynamic_rotate %83 by %c1_i32_39 dim 1 : vector<4x256xf32>, i32 -> vector<4x256xf32>
    %111 = vector.extract_strided_slice %4 {offsets = [3, 0, 0], sizes = [1, 4, 1], strides = [1, 1, 1]} : vector<9x4x1xf32> to vector<1x4x1xf32>
    %112 = vector.shape_cast %111 : vector<1x4x1xf32> to vector<4x1xf32>
    %113 = vector.broadcast %112 : vector<4x1xf32> to vector<4x256xf32>
    %114 = arith.mulf %110, %113 : vector<4x256xf32>
    %115 = arith.addf %109, %114 : vector<4x256xf32>
    %116 = vector.extract_strided_slice %4 {offsets = [4, 0, 0], sizes = [1, 4, 1], strides = [1, 1, 1]} : vector<9x4x1xf32> to vector<1x4x1xf32>
    %117 = vector.shape_cast %116 : vector<1x4x1xf32> to vector<4x1xf32>
    %118 = vector.broadcast %117 : vector<4x1xf32> to vector<4x256xf32>
    %119 = arith.mulf %81, %118 : vector<4x256xf32>
    %120 = arith.addf %115, %119 : vector<4x256xf32>
    %c255_i32 = arith.constant 255 : i32
    %121 = tpu.dynamic_rotate %85 by %c255_i32 dim 1 : vector<4x256xf32>, i32 -> vector<4x256xf32>
    %122 = vector.extract_strided_slice %4 {offsets = [5, 0, 0], sizes = [1, 4, 1], strides = [1, 1, 1]} : vector<9x4x1xf32> to vector<1x4x1xf32>
    %123 = vector.shape_cast %122 : vector<1x4x1xf32> to vector<4x1xf32>
    %124 = vector.broadcast %123 : vector<4x1xf32> to vector<4x256xf32>
    %125 = arith.mulf %121, %124 : vector<4x256xf32>
    %126 = arith.addf %120, %125 : vector<4x256xf32>
    %c241_i32 = arith.constant 241 : i32
    %127 = tpu.dynamic_rotate %83 by %c241_i32 dim 1 : vector<4x256xf32>, i32 -> vector<4x256xf32>
    %cst_40 = arith.constant 0.000000e+00 : f32
    %128 = vector.broadcast %cst_40 : f32 to vector<4x256xf32>
    %129 = arith.select %30, %127, %128 : vector<4x256xi1>, vector<4x256xf32>
    %130 = vector.extract_strided_slice %4 {offsets = [6, 0, 0], sizes = [1, 4, 1], strides = [1, 1, 1]} : vector<9x4x1xf32> to vector<1x4x1xf32>
    %131 = vector.shape_cast %130 : vector<1x4x1xf32> to vector<4x1xf32>
    %132 = vector.broadcast %131 : vector<4x1xf32> to vector<4x256xf32>
    %133 = arith.mulf %129, %132 : vector<4x256xf32>
    %134 = arith.addf %126, %133 : vector<4x256xf32>
    %c240_i32_41 = arith.constant 240 : i32
    %135 = tpu.dynamic_rotate %81 by %c240_i32_41 dim 1 : vector<4x256xf32>, i32 -> vector<4x256xf32>
    %cst_42 = arith.constant 0.000000e+00 : f32
    %136 = vector.broadcast %cst_42 : f32 to vector<4x256xf32>
    %137 = arith.select %30, %135, %136 : vector<4x256xi1>, vector<4x256xf32>
    %138 = vector.extract_strided_slice %4 {offsets = [7, 0, 0], sizes = [1, 4, 1], strides = [1, 1, 1]} : vector<9x4x1xf32> to vector<1x4x1xf32>
    %139 = vector.shape_cast %138 : vector<1x4x1xf32> to vector<4x1xf32>
    %140 = vector.broadcast %139 : vector<4x1xf32> to vector<4x256xf32>
    %141 = arith.mulf %137, %140 : vector<4x256xf32>
    %142 = arith.addf %134, %141 : vector<4x256xf32>
    %c239_i32 = arith.constant 239 : i32
    %143 = tpu.dynamic_rotate %85 by %c239_i32 dim 1 : vector<4x256xf32>, i32 -> vector<4x256xf32>
    %cst_43 = arith.constant 0.000000e+00 : f32
    %144 = vector.broadcast %cst_43 : f32 to vector<4x256xf32>
    %145 = arith.select %30, %143, %144 : vector<4x256xi1>, vector<4x256xf32>
    %146 = vector.extract_strided_slice %4 {offsets = [8, 0, 0], sizes = [1, 4, 1], strides = [1, 1, 1]} : vector<9x4x1xf32> to vector<1x4x1xf32>
    %147 = vector.shape_cast %146 : vector<1x4x1xf32> to vector<4x1xf32>
    %148 = vector.broadcast %147 : vector<4x1xf32> to vector<4x256xf32>
    %149 = arith.mulf %145, %148 : vector<4x256xf32>
    %150 = arith.addf %142, %149 : vector<4x256xf32>
    %cst_44 = arith.constant 3.000000e+00 : f32
    %151 = vector.broadcast %cst_44 : f32 to vector<4x256xf32>
    %152 = arith.addf %150, %151 : vector<4x256xf32>
    %cst_45 = arith.constant 0.166666672 : f32
    %153 = vector.broadcast %cst_45 : f32 to vector<4x256xf32>
    %154 = arith.mulf %152, %153 : vector<4x256xf32>
    %cst_46 = arith.constant 0.000000e+00 : f32
    %cst_47 = arith.constant 1.000000e+00 : f32
    %155 = vector.broadcast %cst_46 : f32 to vector<4x256xf32>
    %156 = arith.maximumf %155, %154 : vector<4x256xf32>
    %157 = vector.broadcast %cst_47 : f32 to vector<4x256xf32>
    %158 = arith.minimumf %157, %156 : vector<4x256xf32>
    %159 = vector.extract_strided_slice %158 {offsets = [0, 0], sizes = [1, 256], strides = [1, 1]} : vector<4x256xf32> to vector<1x256xf32>
    %160 = vector.extract_strided_slice %158 {offsets = [1, 0], sizes = [1, 256], strides = [1, 1]} : vector<4x256xf32> to vector<1x256xf32>
    %161 = vector.extract_strided_slice %158 {offsets = [2, 0], sizes = [1, 256], strides = [1, 1]} : vector<4x256xf32> to vector<1x256xf32>
    %162 = vector.extract_strided_slice %158 {offsets = [3, 0], sizes = [1, 256], strides = [1, 1]} : vector<4x256xf32> to vector<1x256xf32>
    %163 = vector.broadcast %159 : vector<1x256xf32> to vector<32x256xf32>
    %164 = arith.mulf %163, %74 : vector<32x256xf32>
    %165 = vector.broadcast %161 : vector<1x256xf32> to vector<32x256xf32>
    %166 = arith.addf %164, %165 : vector<32x256xf32>
    %167 = vector.broadcast %160 : vector<1x256xf32> to vector<32x256xf32>
    %168 = arith.mulf %167, %74 : vector<32x256xf32>
    %169 = vector.broadcast %162 : vector<1x256xf32> to vector<32x256xf32>
    %170 = arith.addf %168, %169 : vector<32x256xf32>
    %171 = arith.maximumf %166, %170 : vector<32x256xf32>
    %c0_48 = arith.constant 0 : index
    %c0_49 = arith.constant 0 : index
    %c0_50 = arith.constant 0 : index
    %172 = vector.load %arg8[%c0_48, %c0_49, %c0_50] : memref<1x32x256xf32, #tpu.memory_space<vmem>>, vector<1x32x256xf32>
    %173 = vector.shape_cast %172 : vector<1x32x256xf32> to vector<32x256xf32>
    %174 = vector.shape_cast %171 : vector<32x256xf32> to vector<1x32x256xf32>
    tpu.vector_store %arg8[%c0_48, %c0_49, %c0_50], %174 {strides = array<i32>} : memref<1x32x256xf32, #tpu.memory_space<vmem>>, vector<1x32x256xf32>,
    return
  }
  func.func @transform_0(%arg0: i32) -> (i32, i32, i32) {
    %c0_i32 = arith.constant 0 : i32
    %c0_i32_0 = arith.constant 0 : i32
    %c0_i32_1 = arith.constant 0 : i32
    return %arg0, %c0_i32, %c0_i32_0 : i32, i32, i32
  }
  func.func @transform_1(%arg0: i32) -> (i32, i32) {
    %c0_i32 = arith.constant 0 : i32
    %c0_i32_0 = arith.constant 0 : i32
    %c0_i32_1 = arith.constant 0 : i32
    return %c0_i32, %c0_i32_0 : i32, i32
  }
  func.func @transform_2(%arg0: i32) -> (i32, i32) {
    %c0_i32 = arith.constant 0 : i32
    %c0_i32_0 = arith.constant 0 : i32
    %c0_i32_1 = arith.constant 0 : i32
    return %c0_i32, %c0_i32_0 : i32, i32
  }
  func.func @transform_3(%arg0: i32) -> (i32, i32) {
    %c0_i32 = arith.constant 0 : i32
    %c0_i32_0 = arith.constant 0 : i32
    %c0_i32_1 = arith.constant 0 : i32
    return %c0_i32, %c0_i32_0 : i32, i32
  }
  func.func @transform_4(%arg0: i32) -> (i32, i32) {
    %c0_i32 = arith.constant 0 : i32
    %c0_i32_0 = arith.constant 0 : i32
    %c0_i32_1 = arith.constant 0 : i32
    return %c0_i32, %c0_i32_0 : i32, i32
  }
  func.func @transform_5(%arg0: i32) -> (i32, i32, i32) {
    %c0_i32 = arith.constant 0 : i32
    %c0_i32_0 = arith.constant 0 : i32
    %c0_i32_1 = arith.constant 0 : i32
    %c0_i32_2 = arith.constant 0 : i32
    return %c0_i32, %c0_i32_0, %c0_i32_1 : i32, i32, i32
  }
  func.func @transform_6(%arg0: i32) -> (i32, i32) {
    %c0_i32 = arith.constant 0 : i32
    %c0_i32_0 = arith.constant 0 : i32
    %c0_i32_1 = arith.constant 0 : i32
    return %c0_i32, %c0_i32_0 : i32, i32
  }
  func.func @transform_7(%arg0: i32) -> (i32, i32, i32) {
    %c0_i32 = arith.constant 0 : i32
    %c0_i32_0 = arith.constant 0 : i32
    %c0_i32_1 = arith.constant 0 : i32
    return %arg0, %c0_i32, %c0_i32_0 : i32, i32, i32
  }
}

</mosaic_0001>

<llo_original>
// kernel: tpu_custom_call.1
$region0: #{tpu_custom_call.1}
  #allocation0 [shape = 'u32[]', space=smem, size = 0x4, offset = 0x4, fixed_abs, tag = 'smem constant byte address 0x4 - core index']
  #allocation1 [shape = 'u32[144,128]{1,0:T(1,128)}', space=vmem, size = 0x12000, scoped, tag = 'internal scratch']
  %s0 = inlined_call_operand.vmem [shape: f32[2,32,256], index: 0, kind: input, shape index: {}]
  %s1 = inlined_call_operand.vmem [shape: f32[2,32], index: 1, kind: input, shape index: {}]
  %s2 = inlined_call_operand.vmem [shape: f32[2,1], index: 2, kind: input, shape index: {}]
  %s3 = inlined_call_operand.vmem [shape: f32[64,2], index: 3, kind: input, shape index: {}]
  %s4 = inlined_call_operand.vmem [shape: f32[64,1], index: 4, kind: input, shape index: {}]
  %s5 = inlined_call_operand.vmem [shape: f32[9,4,1], index: 5, kind: input, shape index: {}]
  %s6 = inlined_call_operand.vmem [shape: f32[4,1], index: 6, kind: input, shape index: {}]
  %s7 = inlined_call_operand.hbm [shape: f32[2,32,256], index: 7, kind: output, shape index: {}]
  %s8 = sld [smem:[#allocation0]]
  $region61: #{tpu_custom_call.1} parent=0
    _
  %s10 = ssub.s32 1, %s8
  %s11 = scalar_select 0, %s10, %s8
  $region1: #{tpu_custom_call.1} parent=0
    #allocation2 [shape = 'u8[65536]{0}', space=vmem, size = 0x10000, scoped, tag = 'output window, operand 0']
    #allocation3 [shape = 's32[2]{0}', space=sflag, size = 0x8, scoped, tag = 'scoped memory for tpu_custom_call.1']
    %12 = vsyncpa [#allocation3], 0
    %s13 = scalar_lea.sflag [#allocation3], 1
    %14 = vsyncpa %s13, 0
    loop: start=0, step=1, limit=4
    $region2: #{tpu_custom_call.1} parent=1 // loop_pre_header
      _
    $region3: #{tpu_custom_call.1} parent=1 // loop_header
      %s16 = sphi 0, %s20
      %p17 = scmp.ge.s32.totalorder %s16, 4
      %s26 = sphi 0, %s28
      %s29 = sphi 0, %s26
      %s30 = sphi 0, %s29
      %s46 = sphi 0, %s30
      %s50 = sphi 0, %s50
      %s52 = sphi 0, %s50
      %s53 = sphi 0, %s52
      %s67 = sphi 0, %s53
      %s71 = sphi 0, %s71
      %s73 = sphi 0, %s71
      %s74 = sphi 0, %s73
      %s88 = sphi 0, %s74
      %s92 = sphi 0, %s92
      %s94 = sphi 0, %s92
      %s95 = sphi 0, %s94
      %s109 = sphi 0, %s95
      %s113 = sphi 0, %s113
      %s115 = sphi 0, %s113
      %s116 = sphi 0, %s115
      %s130 = sphi 0, %s116
      %s134 = sphi 0, %s134
      %s136 = sphi 0, %s134
      %s137 = sphi 0, %s136
      %s151 = sphi 0, %s137
      %s155 = sphi 0, %s155
      %s157 = sphi 0, %s155
      %s158 = sphi 0, %s157
      %s172 = sphi 0, %s158
      %s178 = sphi 0, %s180
      %s181 = sphi 0, %s178
      %s182 = sphi 0, %s181
      %s198 = sphi 0, %s182
    $region4: #{tpu_custom_call.1} parent=1 // loop_header_branch
      %19 = sbr.rel (%p17) target = $region8
    $region5: #{tpu_custom_call.1} parent=1 // loop_body
      %s21 = ssub.s32 %s16, 1
      %s22 = ssub.s32 %s16, 2
      %s23 = sadd.s32 %s16, 1
      %s24 = ssub.s32 %s16, %s23
      %p25 = scmp.eq.s32.totalorder %s24, 0
      %s27 = sadd.s32 %s26, 1
      %s28 = scalar_select %p25, %s26, %s27
      %p31 = pneg %p25
      %p32 = scmp.eq.s32.totalorder %s16, 1
      %p33 = por %p31, %p32
      %p34 = scmp.ne.s32.totalorder %s26, %s29
      %p35 = scmp.eq.s32.totalorder %s16, 0
      %p36 = por %p34, %p35
      %p37 = scmp.ne.s32.totalorder %s26, %s29
      %p38 = scmp.eq.s32.totalorder %s21, 1
      %p39 = por %p37, %p38
      %p40 = scmp.ne.s32.totalorder %s29, %s30
      %p41 = scmp.eq.s32.totalorder %s21, 0
      %p42 = por %p40, %p41
      %p43 = scmp.ne.s32.totalorder %s29, %s30
      %p44 = scmp.eq.s32.totalorder %s22, 1
      %p45 = por %p43, %p44
      %p47 = scmp.ne.s32.totalorder %s30, %s46
      %p48 = scmp.eq.s32.totalorder %s22, 0
      %p49 = por %p47, %p48
      %s51 = sadd.s32 %s50, 1
      %p54 = scmp.eq.s32.totalorder %s16, 1
      %p55 = scmp.ne.s32.totalorder %s50, %s52
      %p56 = scmp.eq.s32.totalorder %s16, 0
      %p57 = por %p55, %p56
      %p58 = scmp.ne.s32.totalorder %s50, %s52
      %p59 = scmp.eq.s32.totalorder %s21, 1
      %p60 = por %p58, %p59
      %p61 = scmp.ne.s32.totalorder %s52, %s53
      %p62 = scmp.eq.s32.totalorder %s21, 0
      %p63 = por %p61, %p62
      %p64 = scmp.ne.s32.totalorder %s52, %s53
      %p65 = scmp.eq.s32.totalorder %s22, 1
      %p66 = por %p64, %p65
      %p68 = scmp.ne.s32.totalorder %s53, %s67
      %p69 = scmp.eq.s32.totalorder %s22, 0
      %p70 = por %p68, %p69
      %s72 = sadd.s32 %s71, 1
      %p75 = scmp.eq.s32.totalorder %s16, 1
      %p76 = scmp.ne.s32.totalorder %s71, %s73
      %p77 = scmp.eq.s32.totalorder %s16, 0
      %p78 = por %p76, %p77
      %p79 = scmp.ne.s32.totalorder %s71, %s73
      %p80 = scmp.eq.s32.totalorder %s21, 1
      %p81 = por %p79, %p80
      %p82 = scmp.ne.s32.totalorder %s73, %s74
      %p83 = scmp.eq.s32.totalorder %s21, 0
      %p84 = por %p82, %p83
      %p85 = scmp.ne.s32.totalorder %s73, %s74
      %p86 = scmp.eq.s32.totalorder %s22, 1
      %p87 = por %p85, %p86
      %p89 = scmp.ne.s32.totalorder %s74, %s88
      %p90 = scmp.eq.s32.totalorder %s22, 0
      %p91 = por %p89, %p90
      %s93 = sadd.s32 %s92, 1
      %p96 = scmp.eq.s32.totalorder %s16, 1
      %p97 = scmp.ne.s32.totalorder %s92, %s94
      %p98 = scmp.eq.s32.totalorder %s16, 0
      %p99 = por %p97, %p98
      %p100 = scmp.ne.s32.totalorder %s92, %s94
      %p101 = scmp.eq.s32.totalorder %s21, 1
      %p102 = por %p100, %p101
      %p103 = scmp.ne.s32.totalorder %s94, %s95
      %p104 = scmp.eq.s32.totalorder %s21, 0
      %p105 = por %p103, %p104
      %p106 = scmp.ne.s32.totalorder %s94, %s95
      %p107 = scmp.eq.s32.totalorder %s22, 1
      %p108 = por %p106, %p107
      %p110 = scmp.ne.s32.totalorder %s95, %s109
      %p111 = scmp.eq.s32.totalorder %s22, 0
      %p112 = por %p110, %p111
      %s114 = sadd.s32 %s113, 1
      %p117 = scmp.eq.s32.totalorder %s16, 1
      %p118 = scmp.ne.s32.totalorder %s113, %s115
      %p119 = scmp.eq.s32.totalorder %s16, 0
      %p120 = por %p118, %p119
      %p121 = scmp.ne.s32.totalorder %s113, %s115
      %p122 = scmp.eq.s32.totalorder %s21, 1
      %p123 = por %p121, %p122
      %p124 = scmp.ne.s32.totalorder %s115, %s116
      %p125 = scmp.eq.s32.totalorder %s21, 0
      %p126 = por %p124, %p125
      %p127 = scmp.ne.s32.totalorder %s115, %s116
      %p128 = scmp.eq.s32.totalorder %s22, 1
      %p129 = por %p127, %p128
      %p131 = scmp.ne.s32.totalorder %s116, %s130
      %p132 = scmp.eq.s32.totalorder %s22, 0
      %p133 = por %p131, %p132
      %s135 = sadd.s32 %s134, 1
      %p138 = scmp.eq.s32.totalorder %s16, 1
      %p139 = scmp.ne.s32.totalorder %s134, %s136
      %p140 = scmp.eq.s32.totalorder %s16, 0
      %p141 = por %p139, %p140
      %p142 = scmp.ne.s32.totalorder %s134, %s136
      %p143 = scmp.eq.s32.totalorder %s21, 1
      %p144 = por %p142, %p143
      %p145 = scmp.ne.s32.totalorder %s136, %s137
      %p146 = scmp.eq.s32.totalorder %s21, 0
      %p147 = por %p145, %p146
      %p148 = scmp.ne.s32.totalorder %s136, %s137
      %p149 = scmp.eq.s32.totalorder %s22, 1
      %p150 = por %p148, %p149
      %p152 = scmp.ne.s32.totalorder %s137, %s151
      %p153 = scmp.eq.s32.totalorder %s22, 0
      %p154 = por %p152, %p153
      %s156 = sadd.s32 %s155, 1
      %p159 = scmp.eq.s32.totalorder %s16, 1
      %p160 = scmp.ne.s32.totalorder %s155, %s157
      %p161 = scmp.eq.s32.totalorder %s16, 0
      %p162 = por %p160, %p161
      %p163 = scmp.ne.s32.totalorder %s155, %s157
      %p164 = scmp.eq.s32.totalorder %s21, 1
      %p165 = por %p163, %p164
      %p166 = scmp.ne.s32.totalorder %s157, %s158
      %p167 = scmp.eq.s32.totalorder %s21, 0
      %p168 = por %p166, %p167
      %p169 = scmp.ne.s32.totalorder %s157, %s158
      %p170 = scmp.eq.s32.totalorder %s22, 1
      %p171 = por %p169, %p170
      %p173 = scmp.ne.s32.totalorder %s158, %s172
      %p174 = scmp.eq.s32.totalorder %s22, 0
      %p175 = por %p173, %p174
      %s176 = ssub.s32 %s16, %s23
      %p177 = scmp.eq.s32.totalorder %s176, 0
      %s179 = sadd.s32 %s178, 1
      %s180 = scalar_select %p177, %s178, %s179
      %p183 = pneg %p177
      %p184 = scmp.eq.s32.totalorder %s16, 1
      %p185 = por %p183, %p184
      %p186 = scmp.ne.s32.totalorder %s178, %s181
      %p187 = scmp.eq.s32.totalorder %s16, 0
      %p188 = por %p186, %p187
      %p189 = scmp.ne.s32.totalorder %s178, %s181
      %p190 = scmp.eq.s32.totalorder %s21, 1
      %p191 = por %p189, %p190
      %p192 = scmp.ne.s32.totalorder %s181, %s182
      %p193 = scmp.eq.s32.totalorder %s21, 0
      %p194 = por %p192, %p193
      %p195 = scmp.ne.s32.totalorder %s181, %s182
      %p196 = scmp.eq.s32.totalorder %s22, 1
      %p197 = por %p195, %p196
      %p199 = scmp.ne.s32.totalorder %s182, %s198
      %p200 = scmp.eq.s32.totalorder %s22, 0
      %p201 = por %p199, %p200
      %p202 = scmp.le.s32.totalorder 1, %s16
      %p203 = scmp.lt.s32.totalorder %s16, 3
      %p204 = pnand %p202, %p203
      %p205 = pneg %p204
      // Predicated region
      $region9: #{tpu_custom_call.1} parent=5 // pred_check
        _
      $region10: #{tpu_custom_call.1} parent=5 // pred_check_branch
        %207 = sbr.rel (%p204) target = $region12
      $region11: #{tpu_custom_call.1} parent=5 // pred_region
        %s208 = ssub.s32 %s16, 1
        // Predicated region
        $region13: #{tpu_custom_call.1} parent=11 // pred_check
          %p209 = pneg %p63
        $region14: #{tpu_custom_call.1} parent=11 // pred_check_branch
          %211 = sbr.rel (%p209) target = $region16
        $region15: #{tpu_custom_call.1} parent=11 // pred_region
          _
        $region16: #{tpu_custom_call.1} parent=11 // pred_fallthru
          _
        // Predicated region
        $region17: #{tpu_custom_call.1} parent=11 // pred_check
          %p212 = pneg %p84
        $region18: #{tpu_custom_call.1} parent=11 // pred_check_branch
          %214 = sbr.rel (%p212) target = $region20
        $region19: #{tpu_custom_call.1} parent=11 // pred_region
          _
        $region20: #{tpu_custom_call.1} parent=11 // pred_fallthru
          _
        // Predicated region
        $region21: #{tpu_custom_call.1} parent=11 // pred_check
          %p215 = pneg %p105
        $region22: #{tpu_custom_call.1} parent=11 // pred_check_branch
          %217 = sbr.rel (%p215) target = $region24
        $region23: #{tpu_custom_call.1} parent=11 // pred_region
          _
        $region24: #{tpu_custom_call.1} parent=11 // pred_fallthru
          _
        // Predicated region
        $region25: #{tpu_custom_call.1} parent=11 // pred_check
          %p218 = pneg %p126
        $region26: #{tpu_custom_call.1} parent=11 // pred_check_branch
          %220 = sbr.rel (%p218) target = $region28
        $region27: #{tpu_custom_call.1} parent=11 // pred_region
          _
        $region28: #{tpu_custom_call.1} parent=11 // pred_fallthru
          _
        // Predicated region
        $region29: #{tpu_custom_call.1} parent=11 // pred_check
          %p221 = pneg %p147
        $region30: #{tpu_custom_call.1} parent=11 // pred_check_branch
          %223 = sbr.rel (%p221) target = $region32
        $region31: #{tpu_custom_call.1} parent=11 // pred_region
          _
        $region32: #{tpu_custom_call.1} parent=11 // pred_fallthru
          _
        // Predicated region
        $region33: #{tpu_custom_call.1} parent=11 // pred_check
          %p224 = pneg %p168
        $region34: #{tpu_custom_call.1} parent=11 // pred_check_branch
          %226 = sbr.rel (%p224) target = $region36
        $region35: #{tpu_custom_call.1} parent=11 // pred_region
          _
        $region36: #{tpu_custom_call.1} parent=11 // pred_fallthru
          _
      $region12: #{tpu_custom_call.1} parent=5 // pred_fallthru
        _
      %p227 = scmp.lt.s32.totalorder %s16, 2
      // Predicated region
      $region37: #{tpu_custom_call.1} parent=5 // pred_check
        %p228 = pneg %p227
      $region38: #{tpu_custom_call.1} parent=5 // pred_check_branch
        %230 = sbr.rel (%p228) target = $region40
      $region39: #{tpu_custom_call.1} parent=5 // pred_region
        // Predicated region
        $region41: #{tpu_custom_call.1} parent=39 // pred_check
          %p231 = pneg %p36
        $region42: #{tpu_custom_call.1} parent=39 // pred_check_branch
          %233 = sbr.rel (%p231) target = $region44
        $region43: #{tpu_custom_call.1} parent=39 // pred_region
          %p234 = scmp.lt.s32.totalorder %s16, 1
          %s235 = scalar_select %p234, %s16, 1
          %s236 = smul.addr %s235, 8
          %s237 = smul.addr %s236, 8
          %s238 = scalar_lea.vmem %s0, %s237
        $region44: #{tpu_custom_call.1} parent=39 // pred_fallthru
          _
      $region40: #{tpu_custom_call.1} parent=5 // pred_fallthru
        _
      %p239 = scmp.le.s32.totalorder 1, %s16
      %p240 = scmp.lt.s32.totalorder %s16, 3
      %p241 = pnand %p239, %p240
      %p242 = pneg %p241
      // Predicated region
      $region45: #{tpu_custom_call.1} parent=5 // pred_check
        _
      $region46: #{tpu_custom_call.1} parent=5 // pred_check_branch
        %244 = sbr.rel (%p241) target = $region48
      $region47: #{tpu_custom_call.1} parent=5 // pred_region
        %s245 = ssub.s32 %s16, 1
        %p246 = scmp.lt.s32.totalorder %s21, 1
        %s247 = scalar_select %p246, %s21, 1
        %s248 = smul.addr %s247, 8
        %s249 = smul.addr %s248, 8
        %s250 = scalar_lea.vmem %s0, %s249
        %p251 = pneg %p42
        %p252 = pneg %p39
        %p253 = pneg %p63
        %p254 = pneg %p60
        %p255 = pneg %p84
        %p256 = pneg %p81
        %p257 = pneg %p105
        %p258 = pneg %p102
        %p259 = pneg %p126
        %p260 = pneg %p123
        %p261 = pneg %p147
        %p262 = pneg %p144
        %p263 = pneg %p168
        %p264 = pneg %p165
        %p265 = pneg %p194
        %p266 = pneg %p191
        %s267 = sand.u32 %s181, 1
        %s268 = scalar_lea.sflag [#allocation3], %s267
        %s269 = sand.u32 %s181, 1
        %s270 = smul.addr %s269, 64
        %s271 = scalar_lea.vmem [#allocation2], %s270
        %p272 = scmp.lt.s32.totalorder %s21, 1
        %s273 = scalar_select %p272, %s21, 1
        %s274 = smul.addr %s273, 8
        %s275 = smul.addr %s274, 8
        %s276 = scalar_lea.vmem %s0, %s275
        %v277 = vld [vmem:[%s1] sm:$0x3]
        %v278 = vld [vmem:[%s2] sm:$0x3]
        %v279 = vld [vmem:[%s3] sm:$0xff]
        %v280 = vld [vmem:[%s3 + $0x8] sm:$0xff]
        %v281 = vld [vmem:[%s3 + $0x10] sm:$0xff]
        %v282 = vld [vmem:[%s3 + $0x18] sm:$0xff]
        %v283 = vld [vmem:[%s3 + $0x20] sm:$0xff]
        %v284 = vld [vmem:[%s3 + $0x28] sm:$0xff]
        %v285 = vld [vmem:[%s3 + $0x30] sm:$0xff]
        %v286 = vld [vmem:[%s3 + $0x38] sm:$0xff]
        %v287 = vld [vmem:[%s4] sm:$0xff]
        %v288 = vld [vmem:[%s4 + $0x8] sm:$0xff]
        %v289 = vld [vmem:[%s4 + $0x10] sm:$0xff]
        %v290 = vld [vmem:[%s4 + $0x18] sm:$0xff]
        %v291 = vld [vmem:[%s4 + $0x20] sm:$0xff]
        %v292 = vld [vmem:[%s4 + $0x28] sm:$0xff]
        %v293 = vld [vmem:[%s4 + $0x30] sm:$0xff]
        %v294 = vld [vmem:[%s4 + $0x38] sm:$0xff]
        %v295 = vld [vmem:[%s5] sm:$0xf]
        %v296 = vld [vmem:[%s5 + $0x4] sm:$0xf]
        %v297 = vld [vmem:[%s5 + $0x8] sm:$0xf]
        %v298 = vld [vmem:[%s5 + $0xc] sm:$0xf]
        %v299 = vld [vmem:[%s5 + $0x10] sm:$0xf]
        %v300 = vld [vmem:[%s5 + $0x14] sm:$0xf]
        %v301 = vld [vmem:[%s5 + $0x18] sm:$0xf]
        %v302 = vld [vmem:[%s5 + $0x1c] sm:$0xf]
        %v303 = vld [vmem:[%s5 + $0x20] sm:$0xf]
        %v304 = vld [vmem:[%s6] sm:$0xf]
        %v305 = vlaneseq
        %v306 = vand.u32 %v305, 127
        %v307 = vadd.s32 %v306, 128
        %vm308 = vcmp.lt.s32.totalorder %v306, 0
        %v309 = vsub.s32 0, %v306
        %v310 = vsel %vm308, %v309, %v306
        %v311 = vshrl.u32 %v310, 4
        %v312 = vand.u32 %v310, 15
        %v313 = vsub.s32 0, %v312
        %v314 = vsel %vm308, %v313, %v312
        %vm315 = vcmp.lt.s32.totalorder %v307, 0
        %v316 = vsub.s32 0, %v307
        %v317 = vsel %vm315, %v316, %v307
        %v318 = vshrl.u32 %v317, 4
        %v319 = vand.u32 %v317, 15
        %v320 = vsub.s32 0, %v319
        %v321 = vsel %vm315, %v320, %v319
        %vm322 = vcmp.ne.s32.totalorder %v314, 0
        %vm323 = vcmp.ne.s32.totalorder %v321, 0
        %vm324 = vcmp.lt.s32.totalorder %v314, 0
        %vm325 = vcmp.lt.s32.totalorder %v321, 0
        %vm326 = vmand %vm324, %vm322
        %vm327 = vmand %vm325, %vm323
        %v328 = vadd.s32 %v314, 16
        %v329 = vadd.s32 %v321, 16
        %v330 = vsel %vm326, %v328, %v314
        %v331 = vsel %vm327, %v329, %v321
        %vm332 = vcmp.ne.s32.totalorder %v330, 0
        %vm333 = vcmp.ne.s32.totalorder %v331, 0
        %vm334 = vcmp.ne.s32.totalorder %v330, 15
        %vm335 = vcmp.ne.s32.totalorder %v331, 15
        %vm336 = vcmp.ge.s32.totalorder %v306, 16
        %vm337 = vcmp.ge.s32.totalorder %v307, 16
        %vm338 = vcmp.lt.s32.totalorder %v306, 240
        %vm339 = vcmp.lt.s32.totalorder %v307, 240
        %341 = vset.pattern.permute.xlu0 0
        %342 = vperm.xlu0 %341, %v304
        %v343 = vpop.permute.xlu0 %342
        %v345 = vld [vmem:[%s276] sm:$0xff]
        %v346 = vld [vmem:[%s276 + $0x8] sm:$0xff]
        %v347 = vld [vmem:[%s276 + $0x10] sm:$0xff]
        %v348 = vld [vmem:[%s276 + $0x18] sm:$0xff]
        %v349 = vld [vmem:[%s276 + $0x20] sm:$0xff]
        %v350 = vld [vmem:[%s276 + $0x28] sm:$0xff]
        %v351 = vld [vmem:[%s276 + $0x30] sm:$0xff]
        %v352 = vld [vmem:[%s276 + $0x38] sm:$0xff]
        %v353 = vadd.f32 %v345, %v346
        %354 = vadd.xlane.f32.xlu0 %v353
        %v355 = vpop.xlane.xlu0 %354
        %v356 = vadd.f32 %v347, %v348
        %357 = vadd.xlane.f32.xlu0 %v356
        %v358 = vpop.xlane.xlu0 %357
        %v359 = vadd.f32 %v349, %v350
        %360 = vadd.xlane.f32.xlu0 %v359
        %v361 = vpop.xlane.xlu0 %360
        %v362 = vadd.f32 %v351, %v352
        %363 = vadd.xlane.f32.xlu0 %v362
        %v364 = vpop.xlane.xlu0 %363
        %v365 = vmul.f32 %v355, 0.00390625
        %v366 = vmul.f32 %v358, 0.00390625
        %v367 = vmul.f32 %v361, 0.00390625
        %v368 = vmul.f32 %v364, 0.00390625
        %v369 = vmax.f32 %v345, %v346
        %370 = vmax.xlane.f32.xlu0 %v369
        %v371 = vpop.xlane.xlu0 %370
        %v372 = vmax.f32 %v347, %v348
        %373 = vmax.xlane.f32.xlu0 %v372
        %v374 = vpop.xlane.xlu0 %373
        %v375 = vmax.f32 %v349, %v350
        %376 = vmax.xlane.f32.xlu0 %v375
        %v377 = vpop.xlane.xlu0 %376
        %v378 = vmax.f32 %v351, %v352
        %379 = vmax.xlane.f32.xlu0 %v378
        %v380 = vpop.xlane.xlu0 %379
        %vm381 = vcmask 7168
        %v382 = vsel %vm381, %v365, %v371
        %v383 = vsel %vm381, %v366, %v374
        %v384 = vsel %vm381, %v367, %v377
        %v385 = vsel %vm381, %v368, %v380
        %387 = vset.pattern.permute.xlu0 0
        %388 = vperm.xlu0 %387, %v278
        %v389 = vpop.permute.xlu0 %388
        %vm391 = vcmask 261120
        %v393 = vsel %vm391, %v277, 0
        %395 = vmatprep.subr.mxu0 0.0
        %396 = vmatpush1.msra.mxu0 %v382
        %397 = vmatprep.subr.mxu0 0.0
        %398 = vmatpush1.msra.mxu0 %v383
        %399 = vmatprep.subr.mxu0 0.0
        %400 = vmatpush1.msra.mxu0 %v384
        %401 = vmatprep.subr.mxu0 0.0
        %402 = vmatpush1.msra.mxu0 %v385
        %403 = vmatprep.subr.mxu0 0.0
        %404 = vmatpush1.msra.mxu0 0.0
        %405 = vmatprep.subr.mxu0 0.0
        %406 = vmatpush1.msra.mxu0 0.0
        %407 = vmatprep.subr.mxu0 0.0
        %408 = vmatpush1.msra.mxu0 0.0
        %409 = vmatprep.subr.mxu0 0.0
        %410 = vmatpush1.msra.mxu0 0.0
        %411 = vmatprep.subr.mxu0 0.0
        %412 = vmatpush1.msra.mxu0 0.0
        %413 = vmatprep.subr.mxu0 0.0
        %414 = vmatpush1.msra.mxu0 0.0
        %415 = vmatprep.subr.mxu0 0.0
        %416 = vmatpush1.msra.mxu0 0.0
        %417 = vmatprep.subr.mxu0 0.0
        %418 = vmatpush1.msra.mxu0 0.0
        %419 = vmatprep.subr.mxu0 0.0
        %420 = vmatpush1.msra.mxu0 0.0
        %421 = vmatprep.subr.mxu0 0.0
        %422 = vmatpush1.msra.mxu0 0.0
        %423 = vmatprep.subr.mxu0 0.0
        %424 = vmatpush1.msra.mxu0 0.0
        %425 = vmatprep.subr.mxu0 0.0
        %426 = vmatpush1.msra.mxu0 0.0
        %427 = vmatprep.subr.mxu0 0.0
        %428 = vmatpush1.msra.mxu0 0.0
        %429 = vmatprep.subr.mxu0 0.0
        %430 = vmatpush1.msra.mxu0 0.0
        %431 = vmatprep.subr.mxu0 0.0
        %432 = vmatpush1.msra.mxu0 0.0
        %433 = vmatprep.subr.mxu0 0.0
        %434 = vmatpush1.msra.mxu0 0.0
        %435 = vmatprep.subr.mxu0 0.0
        %436 = vmatpush1.msra.mxu0 0.0
        %437 = vmatprep.subr.mxu0 0.0
        %438 = vmatpush1.msra.mxu0 0.0
        %439 = vmatprep.subr.mxu0 0.0
        %440 = vmatpush1.msra.mxu0 0.0
        %441 = vmatprep.subr.mxu0 0.0
        %442 = vmatpush1.msra.mxu0 0.0
        %443 = vmatprep.subr.mxu0 0.0
        %444 = vmatpush1.msra.mxu0 0.0
        %445 = vmatprep.subr.mxu0 0.0
        %446 = vmatpush1.msra.mxu0 0.0
        %447 = vmatprep.subr.mxu0 0.0
        %448 = vmatpush1.msra.mxu0 0.0
        %449 = vmatprep.subr.mxu0 0.0
        %450 = vmatpush1.msra.mxu0 0.0
        %451 = vmatprep.subr.mxu0 0.0
        %452 = vmatpush1.msra.mxu0 0.0
        %453 = vmatprep.subr.mxu0 0.0
        %454 = vmatpush1.msra.mxu0 0.0
        %455 = vmatprep.subr.mxu0 0.0
        %456 = vmatpush1.msra.mxu0 0.0
        %457 = vmatprep.subr.mxu0 0.0
        %458 = vmatpush1.msra.mxu0 0.0
        %459 = vmatprep.mubr.f32.mxu0 0.0
        %460 = vmatmul.mubr.f32.gmra.mrb[0].mxu0 %v393
        %v461 = vpop.f32.mrb[0].mxu0
        %v462 = vadd.f32 %v389, %v461
        %v463 = vpop.f32.mrb[0].mxu0
        %464 = vdwg.mxu0
        %v465 = vxor.u32 %v462, 2147483648
        %v466 = vmul.f32 %v465, 1.442695
        %v467 = vpow.pop %v466
        %v468 = vadd.f32 %v467, 1.0
        %v469 = vrcp.pop %v468
        %v470 = vmul.f32 1.0, %v469
        %v471 = vmul.f32 %v462, %v470
        %473 = vset.pattern.permute.xlu0 0
        %474 = vperm.xlu0 %473, %v287
        %v475 = vpop.permute.xlu0 %474
        %478 = vset.pattern.permute.xlu0 0
        %479 = vperm.xlu0 %478, %v288
        %v480 = vpop.permute.xlu0 %479
        %483 = vset.pattern.permute.xlu0 0
        %484 = vperm.xlu0 %483, %v289
        %v485 = vpop.permute.xlu0 %484
        %488 = vset.pattern.permute.xlu0 0
        %489 = vperm.xlu0 %488, %v290
        %v490 = vpop.permute.xlu0 %489
        %493 = vset.pattern.permute.xlu0 0
        %494 = vperm.xlu0 %493, %v291
        %v495 = vpop.permute.xlu0 %494
        %498 = vset.pattern.permute.xlu0 0
        %499 = vperm.xlu0 %498, %v292
        %v500 = vpop.permute.xlu0 %499
        %503 = vset.pattern.permute.xlu0 0
        %504 = vperm.xlu0 %503, %v293
        %v505 = vpop.permute.xlu0 %504
        %508 = vset.pattern.permute.xlu0 0
        %509 = vperm.xlu0 %508, %v294
        %v510 = vpop.permute.xlu0 %509
        %vm512 = vcmask 15360
        %v514 = vsel %vm512, %v279, 0
        %v517 = vsel %vm512, %v280, 0
        %v520 = vsel %vm512, %v281, 0
        %v523 = vsel %vm512, %v282, 0
        %v526 = vsel %vm512, %v283, 0
        %v529 = vsel %vm512, %v284, 0
        %v532 = vsel %vm512, %v285, 0
        %v535 = vsel %vm512, %v286, 0
        %vm537 = vcmask 1041408
        %v539 = vsel %vm537, %v471, 0
        %541 = vmatprep.subr.mxu0 0.0
        %542 = vmatpush1.msra.mxu0 %v539
        %543 = vmatprep.subr.mxu0 0.0
        %544 = vmatpush1.msra.mxu0 0.0
        %545 = vmatprep.subr.mxu0 0.0
        %546 = vmatpush1.msra.mxu0 0.0
        %547 = vmatprep.subr.mxu0 0.0
        %548 = vmatpush1.msra.mxu0 0.0
        %549 = vmatprep.subr.mxu0 0.0
        %550 = vmatpush1.msra.mxu0 0.0
        %551 = vmatprep.subr.mxu0 0.0
        %552 = vmatpush1.msra.mxu0 0.0
        %553 = vmatprep.subr.mxu0 0.0
        %554 = vmatpush1.msra.mxu0 0.0
        %555 = vmatprep.subr.mxu0 0.0
        %556 = vmatpush1.msra.mxu0 0.0
        %557 = vmatprep.subr.mxu0 0.0
        %558 = vmatpush1.msra.mxu0 0.0
        %559 = vmatprep.subr.mxu0 0.0
        %560 = vmatpush1.msra.mxu0 0.0
        %561 = vmatprep.subr.mxu0 0.0
        %562 = vmatpush1.msra.mxu0 0.0
        %563 = vmatprep.subr.mxu0 0.0
        %564 = vmatpush1.msra.mxu0 0.0
        %565 = vmatprep.subr.mxu0 0.0
        %566 = vmatpush1.msra.mxu0 0.0
        %567 = vmatprep.subr.mxu0 0.0
        %568 = vmatpush1.msra.mxu0 0.0
        %569 = vmatprep.subr.mxu0 0.0
        %570 = vmatpush1.msra.mxu0 0.0
        %571 = vmatprep.subr.mxu0 0.0
        %572 = vmatpush1.msra.mxu0 0.0
        %573 = vmatprep.subr.mxu0 0.0
        %574 = vmatpush1.msra.mxu0 0.0
        %575 = vmatprep.subr.mxu0 0.0
        %576 = vmatpush1.msra.mxu0 0.0
        %577 = vmatprep.subr.mxu0 0.0
        %578 = vmatpush1.msra.mxu0 0.0
        %579 = vmatprep.subr.mxu0 0.0
        %580 = vmatpush1.msra.mxu0 0.0
        %581 = vmatprep.subr.mxu0 0.0
        %582 = vmatpush1.msra.mxu0 0.0
        %583 = vmatprep.subr.mxu0 0.0
        %584 = vmatpush1.msra.mxu0 0.0
        %585 = vmatprep.subr.mxu0 0.0
        %586 = vmatpush1.msra.mxu0 0.0
        %587 = vmatprep.subr.mxu0 0.0
        %588 = vmatpush1.msra.mxu0 0.0
        %589 = vmatprep.subr.mxu0 0.0
        %590 = vmatpush1.msra.mxu0 0.0
        %591 = vmatprep.subr.mxu0 0.0
        %592 = vmatpush1.msra.mxu0 0.0
        %593 = vmatprep.subr.mxu0 0.0
        %594 = vmatpush1.msra.mxu0 0.0
        %595 = vmatprep.subr.mxu0 0.0
        %596 = vmatpush1.msra.mxu0 0.0
        %597 = vmatprep.subr.mxu0 0.0
        %598 = vmatpush1.msra.mxu0 0.0
        %599 = vmatprep.subr.mxu0 0.0
        %600 = vmatpush1.msra.mxu0 0.0
        %601 = vmatprep.subr.mxu0 0.0
        %602 = vmatpush1.msra.mxu0 0.0
        %603 = vmatprep.subr.mxu0 0.0
        %604 = vmatpush1.msra.mxu0 0.0
        %605 = vmatprep.mubr.f32.mxu0 0.0
        %606 = vmatmul.mubr.f32.gmra.mrb[0].mxu0 %v514
        %v607 = vpop.f32.mrb[0].mxu0
        %v608 = vadd.f32 %v475, %v607
        %v609 = vpop.f32.mrb[0].mxu0
        %610 = vmatprep.mubr.f32.mxu0 0.0
        %611 = vmatmul.mubr.f32.gmra.mrb[0].mxu0 %v517
        %v612 = vpop.f32.mrb[0].mxu0
        %v613 = vadd.f32 %v480, %v612
        %v614 = vpop.f32.mrb[0].mxu0
        %615 = vmatprep.mubr.f32.mxu0 0.0
        %616 = vmatmul.mubr.f32.gmra.mrb[0].mxu0 %v520
        %v617 = vpop.f32.mrb[0].mxu0
        %v618 = vadd.f32 %v485, %v617
        %v619 = vpop.f32.mrb[0].mxu0
        %620 = vmatprep.mubr.f32.mxu0 0.0
        %621 = vmatmul.mubr.f32.gmra.mrb[0].mxu0 %v523
        %v622 = vpop.f32.mrb[0].mxu0
        %v623 = vadd.f32 %v490, %v622
        %v624 = vpop.f32.mrb[0].mxu0
        %625 = vmatprep.mubr.f32.mxu0 0.0
        %626 = vmatmul.mubr.f32.gmra.mrb[0].mxu0 %v526
        %v627 = vpop.f32.mrb[0].mxu0
        %v628 = vadd.f32 %v495, %v627
        %v629 = vpop.f32.mrb[0].mxu0
        %630 = vmatprep.mubr.f32.mxu0 0.0
        %631 = vmatmul.mubr.f32.gmra.mrb[0].mxu0 %v529
        %v632 = vpop.f32.mrb[0].mxu0
        %v633 = vadd.f32 %v500, %v632
        %v634 = vpop.f32.mrb[0].mxu0
        %635 = vmatprep.mubr.f32.mxu0 0.0
        %636 = vmatmul.mubr.f32.gmra.mrb[0].mxu0 %v532
        %v637 = vpop.f32.mrb[0].mxu0
        %v638 = vadd.f32 %v505, %v637
        %v639 = vpop.f32.mrb[0].mxu0
        %640 = vmatprep.mubr.f32.mxu0 0.0
        %641 = vmatmul.mubr.f32.gmra.mrb[0].mxu0 %v535
        %v642 = vpop.f32.mrb[0].mxu0
        %v643 = vadd.f32 %v510, %v642
        %v644 = vpop.f32.mrb[0].mxu0
        %645 = vdwg.mxu0
        %v646 = vadd.f32 %v608, 3.0
        %v647 = vadd.f32 %v613, 3.0
        %v648 = vadd.f32 %v618, 3.0
        %v649 = vadd.f32 %v623, 3.0
        %v650 = vadd.f32 %v628, 3.0
        %v651 = vadd.f32 %v633, 3.0
        %v652 = vadd.f32 %v638, 3.0
        %v653 = vadd.f32 %v643, 3.0
        %v654 = vmul.f32 %v646, 0.16666667
        %v655 = vmul.f32 %v647, 0.16666667
        %v656 = vmul.f32 %v648, 0.16666667
        %v657 = vmul.f32 %v649, 0.16666667
        %v658 = vmul.f32 %v650, 0.16666667
        %v659 = vmul.f32 %v651, 0.16666667
        %v660 = vmul.f32 %v652, 0.16666667
        %v661 = vmul.f32 %v653, 0.16666667
        %v662 = vmax.f32 %v654, 0.0
        %v663 = vmax.f32 %v655, 0.0
        %v664 = vmax.f32 %v656, 0.0
        %v665 = vmax.f32 %v657, 0.0
        %v666 = vmax.f32 %v658, 0.0
        %v667 = vmax.f32 %v659, 0.0
        %v668 = vmax.f32 %v660, 0.0
        %v669 = vmax.f32 %v661, 0.0
        %v670 = vmin.f32 %v662, 1.0
        %v671 = vmin.f32 %v663, 1.0
        %v672 = vmin.f32 %v664, 1.0
        %v673 = vmin.f32 %v665, 1.0
        %v674 = vmin.f32 %v666, 1.0
        %v675 = vmin.f32 %v667, 1.0
        %v676 = vmin.f32 %v668, 1.0
        %v677 = vmin.f32 %v669, 1.0
        %679 = vset.pattern.permute.xlu0 0
        %680 = vperm.xlu0 %679, %v670
        %v681 = vpop.permute.xlu0 %680
        %684 = vset.pattern.permute.xlu0 0
        %685 = vperm.xlu0 %684, %v671
        %v686 = vpop.permute.xlu0 %685
        %689 = vset.pattern.permute.xlu0 0
        %690 = vperm.xlu0 %689, %v672
        %v691 = vpop.permute.xlu0 %690
        %694 = vset.pattern.permute.xlu0 0
        %695 = vperm.xlu0 %694, %v673
        %v696 = vpop.permute.xlu0 %695
        %v698 = vmul.f32 %v681, %v345
        %v699 = vmul.f32 %v681, %v346
        %v700 = vmul.f32 %v686, %v347
        %v701 = vmul.f32 %v686, %v348
        %v702 = vmul.f32 %v691, %v349
        %v703 = vmul.f32 %v691, %v350
        %v704 = vmul.f32 %v696, %v351
        %v705 = vmul.f32 %v696, %v352
        %707 = vset.pattern.permute.xlu0 0
        %708 = vperm.xlu0 %707, %v674
        %v709 = vpop.permute.xlu0 %708
        %712 = vset.pattern.permute.xlu0 0
        %713 = vperm.xlu0 %712, %v675
        %v714 = vpop.permute.xlu0 %713
        %717 = vset.pattern.permute.xlu0 0
        %718 = vperm.xlu0 %717, %v676
        %v719 = vpop.permute.xlu0 %718
        %722 = vset.pattern.permute.xlu0 0
        %723 = vperm.xlu0 %722, %v677
        %v724 = vpop.permute.xlu0 %723
        %v726 = vadd.f32 %v698, %v709
        %v727 = vadd.f32 %v699, %v709
        %v728 = vadd.f32 %v700, %v714
        %v729 = vadd.f32 %v701, %v714
        %v730 = vadd.f32 %v702, %v719
        %v731 = vadd.f32 %v703, %v719
        %v732 = vadd.f32 %v704, %v724
        %v733 = vadd.f32 %v705, %v724
        %734 = vset.pattern.permute.xlu0 1
        %735 = vperm.xlu0 %734, %v670
        %v736 = vpop.permute.xlu0 %735
        %738 = vset.pattern.permute.xlu0 1
        %739 = vperm.xlu0 %738, %v671
        %v740 = vpop.permute.xlu0 %739
        %742 = vset.pattern.permute.xlu0 1
        %743 = vperm.xlu0 %742, %v672
        %v744 = vpop.permute.xlu0 %743
        %746 = vset.pattern.permute.xlu0 1
        %747 = vperm.xlu0 %746, %v673
        %v748 = vpop.permute.xlu0 %747
        %v750 = vmul.f32 %v736, %v345
        %v751 = vmul.f32 %v736, %v346
        %v752 = vmul.f32 %v740, %v347
        %v753 = vmul.f32 %v740, %v348
        %v754 = vmul.f32 %v744, %v349
        %v755 = vmul.f32 %v744, %v350
        %v756 = vmul.f32 %v748, %v351
        %v757 = vmul.f32 %v748, %v352
        %758 = vset.pattern.permute.xlu0 1
        %759 = vperm.xlu0 %758, %v674
        %v760 = vpop.permute.xlu0 %759
        %762 = vset.pattern.permute.xlu0 1
        %763 = vperm.xlu0 %762, %v675
        %v764 = vpop.permute.xlu0 %763
        %766 = vset.pattern.permute.xlu0 1
        %767 = vperm.xlu0 %766, %v676
        %v768 = vpop.permute.xlu0 %767
        %770 = vset.pattern.permute.xlu0 1
        %771 = vperm.xlu0 %770, %v677
        %v772 = vpop.permute.xlu0 %771
        %v774 = vadd.f32 %v750, %v760
        %v775 = vadd.f32 %v751, %v760
        %v776 = vadd.f32 %v752, %v764
        %v777 = vadd.f32 %v753, %v764
        %v778 = vadd.f32 %v754, %v768
        %v779 = vadd.f32 %v755, %v768
        %v780 = vadd.f32 %v756, %v772
        %v781 = vadd.f32 %v757, %v772
        %v782 = vmax.f32 %v726, %v774
        %v783 = vmax.f32 %v727, %v775
        %v784 = vmax.f32 %v728, %v776
        %v785 = vmax.f32 %v729, %v777
        %v786 = vmax.f32 %v730, %v778
        %v787 = vmax.f32 %v731, %v779
        %v788 = vmax.f32 %v732, %v780
        %v789 = vmax.f32 %v733, %v781
        %v790 = vadd.f32 %v782, %v784
        %v791 = vadd.f32 %v790, %v786
        %v792 = vadd.f32 %v791, %v788
        %v793 = vrot.slane %v792, 4
        %v794 = vadd.f32 %v792, %v793
        %v795 = vrot.slane %v794, 2
        %v796 = vadd.f32 %v794, %v795
        %v797 = vrot.slane %v796, 1
        %v798 = vadd.f32 %v796, %v797
        %v799 = vadd.f32 %v783, %v785
        %v800 = vadd.f32 %v799, %v787
        %v801 = vadd.f32 %v800, %v789
        %v802 = vrot.slane %v801, 4
        %v803 = vadd.f32 %v801, %v802
        %v804 = vrot.slane %v803, 2
        %v805 = vadd.f32 %v803, %v804
        %v806 = vrot.slane %v805, 1
        %v807 = vadd.f32 %v805, %v806
        %v808 = vmul.f32 %v798, 0.03125
        %v809 = vmul.f32 %v807, 0.03125
        %v810 = vmax.f32 %v782, %v786
        %v811 = vmax.f32 %v784, %v788
        %v812 = vmax.f32 %v810, %v811
        %v813 = vrot.slane %v812, 4
        %v814 = vmax.f32 %v812, %v813
        %v815 = vrot.slane %v814, 2
        %v816 = vmax.f32 %v814, %v815
        %v817 = vrot.slane %v816, 1
        %v818 = vmax.f32 %v816, %v817
        %v819 = vmax.f32 %v783, %v787
        %v820 = vmax.f32 %v785, %v789
        %v821 = vmax.f32 %v819, %v820
        %v822 = vrot.slane %v821, 4
        %v823 = vmax.f32 %v821, %v822
        %v824 = vrot.slane %v823, 2
        %v825 = vmax.f32 %v823, %v824
        %v826 = vrot.slane %v825, 1
        %v827 = vmax.f32 %v825, %v826
        %vm828 = vcmask 1040384
        %v829 = vsel %vm828, %v808, %v818
        %v830 = vsel %vm828, %v809, %v827
        %v831 = vsel %vm537, %v829, %v808
        %v832 = vsel %vm537, %v830, %v809
        %vm833 = vcmask 1042432
        %v834 = vsel %vm833, %v831, %v818
        %v835 = vsel %vm833, %v832, %v827
        %v836 = vsel %vm334, %v834, 0.0
        %v837 = vsel %vm335, %v835, 0.0
        %v838 = vsel %vm332, %v834, 0.0
        %v839 = vsel %vm333, %v835, 0.0
        %840 = vrot.lane.b32.xlu0 %v836, 17
        %v841 = vpop.permute.xlu0 %840
        %842 = vrot.lane.b32.xlu0 %v837, 17
        %v843 = vpop.permute.xlu0 %842
        %vm844 = vcmp.lt.s32.totalorder %v306, 17
        %v845 = vsel %vm844, %v841, %v843
        %v846 = vsel %vm844, %v843, %v841
        %v847 = vsel %vm336, %v846, 0.0
        %v848 = vsel %vm337, %v845, 0.0
        %850 = vset.pattern.permute.xlu0 0
        %851 = vperm.xlu0 %850, %v295
        %v852 = vpop.permute.xlu0 %851
        %v854 = vmul.f32 %v847, %v852
        %v855 = vmul.f32 %v848, %v852
        %v856 = vadd.f32 %v343, %v854
        %v857 = vadd.f32 %v343, %v855
        %858 = vrot.lane.b32.xlu0 %v834, 16
        %v859 = vpop.permute.xlu0 %858
        %860 = vrot.lane.b32.xlu0 %v835, 16
        %v861 = vpop.permute.xlu0 %860
        %vm862 = vcmp.lt.s32.totalorder %v306, 16
        %v863 = vsel %vm862, %v859, %v861
        %v864 = vsel %vm862, %v861, %v859
        %v865 = vsel %vm336, %v864, 0.0
        %v866 = vsel %vm337, %v863, 0.0
        %868 = vset.pattern.permute.xlu0 0
        %869 = vperm.xlu0 %868, %v296
        %v870 = vpop.permute.xlu0 %869
        %v872 = vmul.f32 %v865, %v870
        %v873 = vmul.f32 %v866, %v870
        %v874 = vadd.f32 %v856, %v872
        %v875 = vadd.f32 %v857, %v873
        %876 = vrot.lane.b32.xlu0 %v838, 15
        %v877 = vpop.permute.xlu0 %876
        %878 = vrot.lane.b32.xlu0 %v839, 15
        %v879 = vpop.permute.xlu0 %878
        %vm880 = vcmp.lt.s32.totalorder %v306, 15
        %v881 = vsel %vm880, %v877, %v879
        %v882 = vsel %vm880, %v879, %v877
        %v883 = vsel %vm336, %v882, 0.0
        %v884 = vsel %vm337, %v881, 0.0
        %886 = vset.pattern.permute.xlu0 0
        %887 = vperm.xlu0 %886, %v297
        %v888 = vpop.permute.xlu0 %887
        %v890 = vmul.f32 %v883, %v888
        %v891 = vmul.f32 %v884, %v888
        %v892 = vadd.f32 %v874, %v890
        %v893 = vadd.f32 %v875, %v891
        %894 = vrot.lane.b32.xlu0 %v836, 1
        %v895 = vpop.permute.xlu0 %894
        %896 = vrot.lane.b32.xlu0 %v837, 1
        %v897 = vpop.permute.xlu0 %896
        %vm898 = vcmp.lt.s32.totalorder %v306, 1
        %v899 = vsel %vm898, %v895, %v897
        %v900 = vsel %vm898, %v897, %v895
        %902 = vset.pattern.permute.xlu0 0
        %903 = vperm.xlu0 %902, %v298
        %v904 = vpop.permute.xlu0 %903
        %v906 = vmul.f32 %v900, %v904
        %v907 = vmul.f32 %v899, %v904
        %v908 = vadd.f32 %v892, %v906
        %v909 = vadd.f32 %v893, %v907
        %911 = vset.pattern.permute.xlu0 0
        %912 = vperm.xlu0 %911, %v299
        %v913 = vpop.permute.xlu0 %912
        %v915 = vmul.f32 %v834, %v913
        %v916 = vmul.f32 %v835, %v913
        %v917 = vadd.f32 %v908, %v915
        %v918 = vadd.f32 %v909, %v916
        %919 = vrot.lane.b32.xlu0 %v838, 127
        %v920 = vpop.permute.xlu0 %919
        %921 = vrot.lane.b32.xlu0 %v839, 127
        %v922 = vpop.permute.xlu0 %921
        %vm923 = vcmp.lt.s32.totalorder %v306, 127
        %v924 = vsel %vm923, %v920, %v922
        %v925 = vsel %vm923, %v922, %v920
        %927 = vset.pattern.permute.xlu0 0
        %928 = vperm.xlu0 %927, %v300
        %v929 = vpop.permute.xlu0 %928
        %v931 = vmul.f32 %v924, %v929
        %v932 = vmul.f32 %v925, %v929
        %v933 = vadd.f32 %v917, %v931
        %v934 = vadd.f32 %v918, %v932
        %935 = vrot.lane.b32.xlu0 %v836, 113
        %v936 = vpop.permute.xlu0 %935
        %937 = vrot.lane.b32.xlu0 %v837, 113
        %v938 = vpop.permute.xlu0 %937
        %vm939 = vcmp.lt.s32.totalorder %v306, 113
        %v940 = vsel %vm939, %v936, %v938
        %v941 = vsel %vm939, %v938, %v936
        %v942 = vsel %vm338, %v940, 0.0
        %v943 = vsel %vm339, %v941, 0.0
        %945 = vset.pattern.permute.xlu0 0
        %946 = vperm.xlu0 %945, %v301
        %v947 = vpop.permute.xlu0 %946
        %v949 = vmul.f32 %v942, %v947
        %v950 = vmul.f32 %v943, %v947
        %v951 = vadd.f32 %v933, %v949
        %v952 = vadd.f32 %v934, %v950
        %953 = vrot.lane.b32.xlu0 %v834, 112
        %v954 = vpop.permute.xlu0 %953
        %955 = vrot.lane.b32.xlu0 %v835, 112
        %v956 = vpop.permute.xlu0 %955
        %vm957 = vcmp.lt.s32.totalorder %v306, 112
        %v958 = vsel %vm957, %v954, %v956
        %v959 = vsel %vm957, %v956, %v954
        %v960 = vsel %vm338, %v958, 0.0
        %v961 = vsel %vm339, %v959, 0.0
        %963 = vset.pattern.permute.xlu0 0
        %964 = vperm.xlu0 %963, %v302
        %v965 = vpop.permute.xlu0 %964
        %v967 = vmul.f32 %v960, %v965
        %v968 = vmul.f32 %v961, %v965
        %v969 = vadd.f32 %v951, %v967
        %v970 = vadd.f32 %v952, %v968
        %971 = vrot.lane.b32.xlu0 %v838, 111
        %v972 = vpop.permute.xlu0 %971
        %973 = vrot.lane.b32.xlu0 %v839, 111
        %v974 = vpop.permute.xlu0 %973
        %vm975 = vcmp.lt.s32.totalorder %v306, 111
        %v976 = vsel %vm975, %v972, %v974
        %v977 = vsel %vm975, %v974, %v972
        %v978 = vsel %vm338, %v976, 0.0
        %v979 = vsel %vm339, %v977, 0.0
        %981 = vset.pattern.permute.xlu0 0
        %982 = vperm.xlu0 %981, %v303
        %v983 = vpop.permute.xlu0 %982
        %v985 = vmul.f32 %v978, %v983
        %v986 = vmul.f32 %v979, %v983
        %v987 = vadd.f32 %v969, %v985
        %v988 = vadd.f32 %v970, %v986
        %v989 = vadd.f32 %v987, 3.0
        %v990 = vadd.f32 %v988, 3.0
        %v991 = vmul.f32 %v989, 0.16666667
        %v992 = vmul.f32 %v990, 0.16666667
        %v993 = vmax.f32 %v991, 0.0
        %v994 = vmax.f32 %v992, 0.0
        %v995 = vmin.f32 %v993, 1.0
        %v996 = vmin.f32 %v994, 1.0
        %v997 = vlaneseq
        %v998 = vshrl.u32 %v997, 7
        %v999 = vsub.s32 0, %v998
        %v1000 = vrot.slane %v995, %v999
        %v1001 = vlaneseq
        %v1002 = vshrl.u32 %v1001, 7
        %v1003 = vsub.s32 0, %v1002
        %v1004 = vrot.slane %v996, %v1003
        %v1005 = vmul.f32 %v1000, %v782
        %v1006 = vmul.f32 %v1004, %v783
        %v1007 = vmul.f32 %v1000, %v784
        %v1008 = vmul.f32 %v1004, %v785
        %v1009 = vmul.f32 %v1000, %v786
        %v1010 = vmul.f32 %v1004, %v787
        %v1011 = vmul.f32 %v1000, %v788
        %v1012 = vmul.f32 %v1004, %v789
        %v1013 = vlaneseq
        %v1014 = vshrl.u32 %v1013, 7
        %v1015 = vsub.s32 2, %v1014
        %v1016 = vrot.slane %v995, %v1015
        %v1017 = vlaneseq
        %v1018 = vshrl.u32 %v1017, 7
        %v1019 = vsub.s32 2, %v1018
        %v1020 = vrot.slane %v996, %v1019
        %v1021 = vadd.f32 %v1005, %v1016
        %v1022 = vadd.f32 %v1006, %v1020
        %v1023 = vadd.f32 %v1007, %v1016
        %v1024 = vadd.f32 %v1008, %v1020
        %v1025 = vadd.f32 %v1009, %v1016
        %v1026 = vadd.f32 %v1010, %v1020
        %v1027 = vadd.f32 %v1011, %v1016
        %v1028 = vadd.f32 %v1012, %v1020
        %v1029 = vlaneseq
        %v1030 = vshrl.u32 %v1029, 7
        %v1031 = vsub.s32 1, %v1030
        %v1032 = vrot.slane %v995, %v1031
        %v1033 = vlaneseq
        %v1034 = vshrl.u32 %v1033, 7
        %v1035 = vsub.s32 1, %v1034
        %v1036 = vrot.slane %v996, %v1035
        %v1037 = vmul.f32 %v1032, %v782
        %v1038 = vmul.f32 %v1036, %v783
        %v1039 = vmul.f32 %v1032, %v784
        %v1040 = vmul.f32 %v1036, %v785
        %v1041 = vmul.f32 %v1032, %v786
        %v1042 = vmul.f32 %v1036, %v787
        %v1043 = vmul.f32 %v1032, %v788
        %v1044 = vmul.f32 %v1036, %v789
        %v1045 = vlaneseq
        %v1046 = vshrl.u32 %v1045, 7
        %v1047 = vsub.s32 3, %v1046
        %v1048 = vrot.slane %v995, %v1047
        %v1049 = vlaneseq
        %v1050 = vshrl.u32 %v1049, 7
        %v1051 = vsub.s32 3, %v1050
        %v1052 = vrot.slane %v996, %v1051
        %v1053 = vadd.f32 %v1037, %v1048
        %v1054 = vadd.f32 %v1038, %v1052
        %v1055 = vadd.f32 %v1039, %v1048
        %v1056 = vadd.f32 %v1040, %v1052
        %v1057 = vadd.f32 %v1041, %v1048
        %v1058 = vadd.f32 %v1042, %v1052
        %v1059 = vadd.f32 %v1043, %v1048
        %v1060 = vadd.f32 %v1044, %v1052
        %v1061 = vmax.f32 %v1021, %v1053
        %v1062 = vmax.f32 %v1022, %v1054
        %v1063 = vmax.f32 %v1023, %v1055
        %v1064 = vmax.f32 %v1024, %v1056
        %v1065 = vmax.f32 %v1025, %v1057
        %v1066 = vmax.f32 %v1026, %v1058
        %v1067 = vmax.f32 %v1027, %v1059
        %v1068 = vmax.f32 %v1028, %v1060
        %1069 = vst [vmem:[%s271] sm:$0xff] %v1061
        %1070 = vst [vmem:[%s271 + $0x8] sm:$0xff] %v1062
        %1071 = vst [vmem:[%s271 + $0x10] sm:$0xff] %v1063
        %1072 = vst [vmem:[%s271 + $0x18] sm:$0xff] %v1064
        %1073 = vst [vmem:[%s271 + $0x20] sm:$0xff] %v1065
        %1074 = vst [vmem:[%s271 + $0x28] sm:$0xff] %v1066
        %1075 = vst [vmem:[%s271 + $0x30] sm:$0xff] %v1067
        %1076 = vst [vmem:[%s271 + $0x38] sm:$0xff] %v1068
        %s1077 = sand.u32 %s181, 1
        %s1078 = scalar_lea.sflag [#allocation3], %s1077
        %s1079 = sand.u32 %s181, 1
        %s1080 = smul.addr %s1079, 64
        %s1081 = scalar_lea.vmem [#allocation2], %s1080
        // Predicated region
        $region49: #{tpu_custom_call.1} parent=47 // pred_check
          %p1082 = pneg %p191
        $region50: #{tpu_custom_call.1} parent=47 // pred_check_branch
          %1084 = sbr.rel (%p1082) target = $region52
        $region51: #{tpu_custom_call.1} parent=47 // pred_region
          %s1086 = ssub.s32 1024, 1024
          %1087 = vsyncadd %s1078, %s1086
          %s1088 = smul.addr %s21, 8
          %s1089 = smul.addr %s1088, 128
          %s1090 = scalar_lea.hbm %s7, %s1089
          %s1091 = sshll.u32 %s1081, 4
          %s1092 = int_to_ptr.vmem [resolvable:$true] %s1091
          %1097 = dma.vmem_to_hbm [thread:$0]  %s1092, 1024, %s1090, %s1078, 256, 256, 16
        $region52: #{tpu_custom_call.1} parent=47 // pred_fallthru
          _
      $region48: #{tpu_custom_call.1} parent=5 // pred_fallthru
        _
      %p1098 = scmp.le.s32.totalorder 2, %s16
      // Predicated region
      $region53: #{tpu_custom_call.1} parent=5 // pred_check
        %p1099 = pneg %p1098
      $region54: #{tpu_custom_call.1} parent=5 // pred_check_branch
        %1101 = sbr.rel (%p1099) target = $region56
      $region55: #{tpu_custom_call.1} parent=5 // pred_region
        %s1102 = ssub.s32 %s16, 2
        // Predicated region
        $region57: #{tpu_custom_call.1} parent=55 // pred_check
          %p1103 = pneg %p197
        $region58: #{tpu_custom_call.1} parent=55 // pred_check_branch
          %1105 = sbr.rel (%p1103) target = $region60
        $region59: #{tpu_custom_call.1} parent=55 // pred_region
          %s1106 = sand.u32 %s182, 1
          %s1107 = scalar_lea.sflag [#allocation3], %s1106
          %s1108 = sand.u32 %s182, 1
          %s1109 = smul.addr %s1108, 64
          %s1110 = scalar_lea.vmem [#allocation2], %s1109
          %1111 = dma.done %s1107, 1024
        $region60: #{tpu_custom_call.1} parent=55 // pred_fallthru
          _
      $region56: #{tpu_custom_call.1} parent=5 // pred_fallthru
        _
    $region6: #{tpu_custom_call.1} parent=1 // loop_footer
      %s20 = sadd.s32 1, %s16
    $region7: #{tpu_custom_call.1} parent=1 // loop_footer_branch
      %15 = sbr.rel target = $region3
    $region8: #{tpu_custom_call.1} parent=1 // loop_exit
      _
    %1112 = vsyncpa [#allocation3], 1
    %s1113 = scalar_lea.sflag [#allocation3], 1
    %1114 = vsyncpa %s1113, 1

</llo_original>
